<compile_context>
chip_gen: v7x
topology: tpu7x:2x2x1
jax: 0.10.0
libtpu: 0.0.40
codegen_flags: <defaults>
</compile_context>

<pallas_src>
from functools import partial

import numpy as np
import jax
import jax.numpy as jnp
from jax.experimental import pallas as pl
from jax.experimental.pallas import tpu as pltpu


def _round_up(x, m):
    return ((x + m - 1) // m) * m


# ----------------------------------------------------------------------------
# Pallas kernel: fused positional encoding + transform_net MLP + affine
# coupling + logabsdet reduction, all in (feature, N)-major layout.
# ----------------------------------------------------------------------------
def _coupling_kernel(x_ref, ctx_ref, w1_ref, b1_ref, w2_ref, b2_ref, out_ref,
                     *, num_identity, num_transform, freqs):
    x = x_ref[...]                                        # (features, T) f32
    idt = x[:num_identity, :]                             # identity rows
    tr = x[num_identity:, :]                              # transform rows
    ctx = ctx_ref[...].astype(jnp.float32)                # (ctx_dim, T)

    # fused positional_encoding_1 (sin/cos hit the otherwise-idle EUP slot)
    parts = [idt]
    for f in freqs:                                       # static python loop
        parts.append(jnp.sin(f * idt))
        parts.append(jnp.cos(f * idt))
    parts.append(ctx)
    mlp_in = jnp.concatenate(parts, axis=0)               # (in_dim, T) f32
    mlp_in = mlp_in.astype(jnp.bfloat16)                  # matmul operand only

    # transform_net: Linear -> ReLU -> Linear  (bf16 MXU, f32 accumulate)
    h = jnp.dot(w1_ref[...], mlp_in,
                preferred_element_type=jnp.float32)       # (H, T) f32
    h = jnp.maximum(h + b1_ref[...], 0.0)
    params = jnp.dot(w2_ref[...], h.astype(jnp.bfloat16),
                     preferred_element_type=jnp.float32)  # (2*nt, T) f32
    params = params + b2_ref[...]

    # affine coupling transform (nflows AffineCouplingTransform semantics)
    shift = params[:num_transform, :]                     # (nt, T)
    u = params[num_transform:, :]                         # (nt, T)
    # sigmoid(u+2) + eps; reciprocal goes to EUP (approx error ~2^-12, well
    # below the bf16-matmul noise floor).
    scale = pl.reciprocal(1.0 + jnp.exp(-(u + 2.0)), approx=True) + 1e-3
    y = tr * scale + shift                                # (nt, T)
    logdet = jnp.sum(jnp.log(scale), axis=0, keepdims=True)   # (1, T)

    # single lane-dense packed store: [identity rows | transformed rows | logdet]
    out_ref[...] = jnp.concatenate([idt, y, logdet], axis=0)


# ----------------------------------------------------------------------------
# Wrapper: static feature permutation, batch tiling, packed-output unpacking
# ----------------------------------------------------------------------------
def coupling_forward(inputs, context, params, mask, encode, tile_n=1024):
    """Mirrors Coupling.forward for 2D inputs with encode != None."""
    mask = np.asarray(mask)
    identity_idx = np.where(mask <= 0)[0]
    transform_idx = np.where(mask > 0)[0]
    perm = np.concatenate([identity_idx, transform_idx])
    inv_perm = np.argsort(perm)

    n_id = len(identity_idx)
    n_tr = len(transform_idx)
    N, features = inputs.shape
    ctx_dim = context.shape[1]

    in_dim, hidden = params["w1"].shape
    p_out = params["w2"].shape[1]
    assert p_out == 2 * n_tr

    # TODO(synk): exact basis/ordering of neusample's encoding.positional_encoding_1
    # is not in the provided source; include-input NeRF-style linspace basis assumed.
    freqs = np.linspace(2.0 ** 0, 2.0 ** (encode - 1), encode, dtype=np.float32)
    assert in_dim == n_id * (1 + 2 * encode) + ctx_dim

    # Static permutation + transpose to feature-major (single XLA pass each).
    x_t = jnp.take(inputs.T, perm, axis=0)                # (features, N) f32
    ctx_t = context.T.astype(jnp.bfloat16)                # (ctx_dim, N)

    # Batch tiling (lane dim must be a multiple of 128).
    tile_n = int(min(tile_n, _round_up(max(N, 1), 128)))
    tile_n = _round_up(tile_n, 128)
    n_pad = _round_up(N, tile_n)
    if n_pad != N:
        pad = ((0, 0), (0, n_pad - N))
        x_t = jnp.pad(x_t, pad)
        ctx_t = jnp.pad(ctx_t, pad)
    num_tiles = n_pad // tile_n

    # Weights: feature-major, bf16 matmul operands; biases stay f32.
    w1_t = params["w1"].T.astype(jnp.bfloat16)            # (H, in_dim)
    b1_t = params["b1"].reshape(-1, 1).astype(jnp.float32)    # (H, 1)
    w2_t = params["w2"].T.astype(jnp.bfloat16)            # (2*nt, H)
    b2_t = params["b2"].reshape(-1, 1).astype(jnp.float32)    # (2*nt, 1)

    out_rows = n_id + n_tr + 1

    cost = pl.CostEstimate(
        flops=2 * n_pad * (hidden * in_dim + p_out * hidden),
        transcendentals=n_pad * (2 * encode * n_id + 2 * n_tr),
        bytes_accessed=(x_t.size * 4 + ctx_t.size * 2
                        + w1_t.size * 2 + b1_t.size * 4
                        + w2_t.size * 2 + b2_t.size * 4
                        + out_rows * n_pad * 4),
    )

    packed = pl.pallas_call(
        partial(_coupling_kernel,
                num_identity=n_id,
                num_transform=n_tr,
                freqs=tuple(float(f) for f in freqs)),
        grid=(num_tiles,),
        in_specs=[
            pl.BlockSpec((features, tile_n), lambda i: (0, i)),
            pl.BlockSpec((ctx_dim, tile_n), lambda i: (0, i)),
            # weights/biases: constant index_map -> VMEM-resident across grid
            pl.BlockSpec(w1_t.shape, lambda i: (0, 0)),
            pl.BlockSpec(b1_t.shape, lambda i: (0, 0)),
            pl.BlockSpec(w2_t.shape, lambda i: (0, 0)),
            pl.BlockSpec(b2_t.shape, lambda i: (0, 0)),
        ],
        out_specs=pl.BlockSpec((out_rows, tile_n), lambda i: (0, i)),
        out_shape=jax.ShapeDtypeStruct((out_rows, n_pad), jnp.float32),
        compiler_params=pltpu.CompilerParams(
            dimension_semantics=("parallel",)),
        cost_estimate=cost,
    )(x_t, ctx_t, w1_t, b1_t, w2_t, b2_t)

    # Unpack: rows [0:features] are the outputs in `perm` order; last row = logdet.
    out_perm_t = packed[:features, :N]                    # (features, N)
    outputs = out_perm_t.T[:, inv_perm]                   # (N, features), orig order
    logabsdet = packed[features, :N]                      # (N,)
    return outputs, logabsdet


# ----------------------------------------------------------------------------
# Pure-JAX reference (same assumed semantics) for correctness checking
# ----------------------------------------------------------------------------
def _reference_forward(inputs, context, params, mask, encode):
    mask = np.asarray(mask)
    id_idx = np.where(mask <= 0)[0]
    tr_idx = np.where(mask > 0)[0]
    x_id = inputs[:, id_idx]
    x_tr = inputs[:, tr_idx]
    freqs = np.linspace(2.0 ** 0, 2.0 ** (encode - 1), encode, dtype=np.float32)
    parts = [x_id]
    for f in freqs:
        parts.append(jnp.sin(f * x_id))
        parts.append(jnp.cos(f * x_id))
    mlp_in = jnp.concatenate(parts + [context], axis=1)
    h = jnp.maximum(mlp_in @ params["w1"] + params["b1"], 0.0)
    p = h @ params["w2"] + params["b2"]
    nt = len(tr_idx)
    shift, u = p[:, :nt], p[:, nt:]
    scale = jax.nn.sigmoid(u + 2.0) + 1e-3
    y = x_tr * scale + shift
    ld = jnp.sum(jnp.log(scale), axis=1)
    out = jnp.zeros_like(inputs)
    out = out.at[:, id_idx].set(x_id).at[:, tr_idx].set(y)
    return out, ld


# ----------------------------------------------------------------------------
# Main
# ----------------------------------------------------------------------------
if __name__ == "__main__":
    key = jax.random.PRNGKey(0)
    k_in, k_ctx, k_w1, k_b1, k_w2, k_b2 = jax.random.split(key, 6)

    # Module config (small, consistent with the 2D NxD forward path)
    N = 300                              # batch (non-multiple of 128 -> padding path)
    mask = np.array([0, 1, 0, 1])        # features = 4
    features = len(mask)
    num_identity = int(np.sum(mask <= 0))     # 2
    num_transform = int(np.sum(mask > 0))     # 2
    encode = 4                           # positional-encoding frequencies
    context_dim = 6
    hidden = 32

    pe_dim = num_identity * (1 + 2 * encode)      # 18
    in_dim = pe_dim + context_dim                 # 24
    out_dim = num_transform * 2                   # affine: shift + scale

    params = {
        "w1": jax.random.normal(k_w1, (in_dim, hidden), jnp.float32) * 0.1,
        "b1": jax.random.normal(k_b1, (1, hidden), jnp.float32) * 0.01,
        "w2": jax.random.normal(k_w2, (hidden, out_dim), jnp.float32) * 0.1,
        "b2": jax.random.normal(k_b2, (1, out_dim), jnp.float32) * 0.01,
    }

    inputs = jax.random.normal(k_in, (N, features), jnp.float32)
    context = jax.random.normal(k_ctx, (N, context_dim), jnp.float32)

    # small tile so the demo exercises a multi-step (pipelined) grid
    outputs, logabsdet = coupling_forward(inputs, context, params, mask,
                                          encode, tile_n=128)
    jax.block_until_ready((outputs, logabsdet))

    ref_out, ref_ld = _reference_forward(inputs, context, params, mask, encode)

    assert outputs.shape == (N, features)
    assert logabsdet.shape == (N,)
    # identity features must pass through unchanged
    id_idx = np.where(mask <= 0)[0]
    assert bool(jnp.allclose(outputs[:, id_idx], inputs[:, id_idx]))
    # match the f32 reference (bf16 matmul operands -> loose tolerance)
    assert bool(jnp.allclose(outputs, ref_out, atol=2e-2, rtol=2e-2))
    assert bool(jnp.allclose(logabsdet, ref_ld, atol=2e-2, rtol=2e-2))

    print("KERNEL_OK")
</pallas_src>

<mosaic_0001>
module attributes {stable_mosaic.version = 11 : i64} {
  func.func @_coupling_kernel(%arg0: i32, %arg1: memref<4x128xf32, #tpu.memory_space<vmem>>, %arg2: memref<6x128xbf16, #tpu.memory_space<vmem>>, %arg3: memref<32x24xbf16, #tpu.memory_space<vmem>>, %arg4: memref<32x1xf32, #tpu.memory_space<vmem>>, %arg5: memref<4x32xbf16, #tpu.memory_space<vmem>>, %arg6: memref<4x1xf32, #tpu.memory_space<vmem>>, %arg7: memref<5x128xf32, #tpu.memory_space<vmem>>) attributes {dimension_semantics = [#tpu.dimension_semantics<parallel>], iteration_bounds = array<i64: 3>, scalar_prefetch = 0 : i64, scratch_operands = 0 : i64, tpu.core_type = #tpu.core_type<tc>, window_params = [{transform_indices = @transform_0, window_bounds = array<i64: 4, 128>}, {transform_indices = @transform_1, window_bounds = array<i64: 6, 128>}, {pipeline_mode = #tpu.pipeline_mode<synchronous>, transform_indices = @transform_2, window_bounds = array<i64: 32, 24>}, {pipeline_mode = #tpu.pipeline_mode<synchronous>, transform_indices = @transform_3, window_bounds = array<i64: 32, 1>}, {pipeline_mode = #tpu.pipeline_mode<synchronous>, transform_indices = @transform_4, window_bounds = array<i64: 4, 32>}, {pipeline_mode = #tpu.pipeline_mode<synchronous>, transform_indices = @transform_5, window_bounds = array<i64: 4, 1>}, {transform_indices = @transform_6, window_bounds = array<i64: 5, 128>}]} {
    %c0 = arith.constant 0 : index
    %c0_0 = arith.constant 0 : index
    %0 = vector.load %arg1[%c0, %c0_0] : memref<4x128xf32, #tpu.memory_space<vmem>>, vector<4x128xf32>
    %1 = vector.extract_strided_slice %0 {offsets = [0, 0], sizes = [2, 128], strides = [1, 1]} : vector<4x128xf32> to vector<2x128xf32>
    %2 = vector.extract_strided_slice %0 {offsets = [2, 0], sizes = [2, 128], strides = [1, 1]} : vector<4x128xf32> to vector<2x128xf32>
    %c0_1 = arith.constant 0 : index
    %c0_2 = arith.constant 0 : index
    %3 = vector.load %arg2[%c0_1, %c0_2] : memref<6x128xbf16, #tpu.memory_space<vmem>>, vector<6x128xbf16>
    %4 = arith.extf %3 : vector<6x128xbf16> to vector<6x128xf32>
    %cst = arith.constant 1.000000e+00 : f32
    %5 = vector.broadcast %cst : f32 to vector<2x128xf32>
    %6 = arith.mulf %5, %1 : vector<2x128xf32>
    %7 = math.sin %6 : vector<2x128xf32>
    %cst_3 = arith.constant 1.000000e+00 : f32
    %8 = vector.broadcast %cst_3 : f32 to vector<2x128xf32>
    %9 = arith.mulf %8, %1 : vector<2x128xf32>
    %10 = math.cos %9 : vector<2x128xf32>
    %cst_4 = arith.constant 3.33333325 : f32
    %11 = vector.broadcast %cst_4 : f32 to vector<2x128xf32>
    %12 = arith.mulf %11, %1 : vector<2x128xf32>
    %13 = math.sin %12 : vector<2x128xf32>
    %cst_5 = arith.constant 3.33333325 : f32
    %14 = vector.broadcast %cst_5 : f32 to vector<2x128xf32>
    %15 = arith.mulf %14, %1 : vector<2x128xf32>
    %16 = math.cos %15 : vector<2x128xf32>
    %cst_6 = arith.constant 5.66666651 : f32
    %17 = vector.broadcast %cst_6 : f32 to vector<2x128xf32>
    %18 = arith.mulf %17, %1 : vector<2x128xf32>
    %19 = math.sin %18 : vector<2x128xf32>
    %cst_7 = arith.constant 5.66666651 : f32
    %20 = vector.broadcast %cst_7 : f32 to vector<2x128xf32>
    %21 = arith.mulf %20, %1 : vector<2x128xf32>
    %22 = math.cos %21 : vector<2x128xf32>
    %cst_8 = arith.constant 8.000000e+00 : f32
    %23 = vector.broadcast %cst_8 : f32 to vector<2x128xf32>
    %24 = arith.mulf %23, %1 : vector<2x128xf32>
    %25 = math.sin %24 : vector<2x128xf32>
    %cst_9 = arith.constant 8.000000e+00 : f32
    %26 = vector.broadcast %cst_9 : f32 to vector<2x128xf32>
    %27 = arith.mulf %26, %1 : vector<2x128xf32>
    %28 = math.cos %27 : vector<2x128xf32>
    %29 = tpu.concatenate %1, %7, %10, %13, %16, %19, %22, %25, %28, %4 in 0 : vector<2x128xf32>, vector<2x128xf32>, vector<2x128xf32>, vector<2x128xf32>, vector<2x128xf32>, vector<2x128xf32>, vector<2x128xf32>, vector<2x128xf32>, vector<2x128xf32>, vector<6x128xf32> -> vector<24x128xf32>
    %30 = arith.truncf %29 : vector<24x128xf32> to vector<24x128xbf16>
    %c0_10 = arith.constant 0 : index
    %c0_11 = arith.constant 0 : index
    %31 = vector.load %arg3[%c0_10, %c0_11] : memref<32x24xbf16, #tpu.memory_space<vmem>>, vector<32x24xbf16>
    %cst_12 = arith.constant dense<0.000000e+00> : vector<32x128xf32>
    %32 = tpu.matmul %31, %30, %cst_12 {dimension_numbers = #tpu.dot_dimension_numbers<[1], [0], [0], [1], [0, 0, 1, 1], [], []>} : vector<32x24xbf16>, vector<24x128xbf16>, vector<32x128xf32> -> vector<32x128xf32>
    %c0_13 = arith.constant 0 : index
    %c0_14 = arith.constant 0 : index
    %33 = vector.load %arg4[%c0_13, %c0_14] : memref<32x1xf32, #tpu.memory_space<vmem>>, vector<32x1xf32>
    %34 = vector.broadcast %33 : vector<32x1xf32> to vector<32x128xf32>
    %35 = arith.addf %32, %34 : vector<32x128xf32>
    %cst_15 = arith.constant 0.000000e+00 : f32
    %36 = vector.broadcast %cst_15 : f32 to vector<32x128xf32>
    %37 = arith.maximumf %35, %36 : vector<32x128xf32>
    %c0_16 = arith.constant 0 : index
    %c0_17 = arith.constant 0 : index
    %38 = vector.load %arg5[%c0_16, %c0_17] : memref<4x32xbf16, #tpu.memory_space<vmem>>, vector<4x32xbf16>
    %39 = arith.truncf %37 : vector<32x128xf32> to vector<32x128xbf16>
    %cst_18 = arith.constant dense<0.000000e+00> : vector<4x128xf32>
    %40 = tpu.matmul %38, %39, %cst_18 {dimension_numbers = #tpu.dot_dimension_numbers<[1], [0], [0], [1], [0, 0, 1, 1], [], []>} : vector<4x32xbf16>, vector<32x128xbf16>, vector<4x128xf32> -> vector<4x128xf32>
    %c0_19 = arith.constant 0 : index
    %c0_20 = arith.constant 0 : index
    %41 = vector.load %arg6[%c0_19, %c0_20] : memref<4x1xf32, #tpu.memory_space<vmem>>, vector<4x1xf32>
    %42 = vector.broadcast %41 : vector<4x1xf32> to vector<4x128xf32>
    %43 = arith.addf %40, %42 : vector<4x128xf32>
    %44 = vector.extract_strided_slice %43 {offsets = [0, 0], sizes = [2, 128], strides = [1, 1]} : vector<4x128xf32> to vector<2x128xf32>
    %45 = vector.extract_strided_slice %43 {offsets = [2, 0], sizes = [2, 128], strides = [1, 1]} : vector<4x128xf32> to vector<2x128xf32>
    %cst_21 = arith.constant 2.000000e+00 : f32
    %46 = vector.broadcast %cst_21 : f32 to vector<2x128xf32>
    %47 = arith.addf %45, %46 : vector<2x128xf32>
    %cst_22 = arith.constant 0.000000e+00 : f32
    %48 = vector.broadcast %cst_22 : f32 to vector<2x128xf32>
    %49 = arith.subf %48, %47 : vector<2x128xf32>
    %50 = math.exp %49 : vector<2x128xf32>
    %cst_23 = arith.constant 1.000000e+00 : f32
    %51 = vector.broadcast %cst_23 : f32 to vector<2x128xf32>
    %52 = arith.addf %51, %50 : vector<2x128xf32>
    %53 = tpu.reciprocal %52 {approx = true} : vector<2x128xf32> -> vector<2x128xf32>
    %cst_24 = arith.constant 1.000000e-03 : f32
    %54 = vector.broadcast %cst_24 : f32 to vector<2x128xf32>
    %55 = arith.addf %53, %54 : vector<2x128xf32>
    %56 = arith.mulf %2, %55 : vector<2x128xf32>
    %57 = arith.addf %56, %44 : vector<2x128xf32>
    %58 = math.log %55 : vector<2x128xf32>
    %cst_25 = arith.constant dense<0.000000e+00> : vector<128xf32>
    %59 = vector.multi_reduction <add>, %58, %cst_25 [0] : vector<2x128xf32> to vector<128xf32>
    %60 = vector.shape_cast %59 : vector<128xf32> to vector<1x128xf32>
    %61 = tpu.concatenate %1, %57, %60 in 0 : vector<2x128xf32>, vector<2x128xf32>, vector<1x128xf32> -> vector<5x128xf32>
    %c0_26 = arith.constant 0 : index
    %c0_27 = arith.constant 0 : index
    %62 = vector.load %arg7[%c0_26, %c0_27] : memref<5x128xf32, #tpu.memory_space<vmem>>, vector<5x128xf32>
    tpu.vector_store %arg7[%c0_26, %c0_27], %61 {strides = array<i32>} : memref<5x128xf32, #tpu.memory_space<vmem>>, vector<5x128xf32>,
    return
  }
  func.func @transform_0(%arg0: i32) -> (i32, i32) {
    %c0_i32 = arith.constant 0 : i32
    %c0_i32_0 = arith.constant 0 : i32
    return %c0_i32, %arg0 : i32, i32
  }
  func.func @transform_1(%arg0: i32) -> (i32, i32) {
    %c0_i32 = arith.constant 0 : i32
    %c0_i32_0 = arith.constant 0 : i32
    return %c0_i32, %arg0 : i32, i32
  }
  func.func @transform_2(%arg0: i32) -> (i32, i32) {
    %c0_i32 = arith.constant 0 : i32
    %c0_i32_0 = arith.constant 0 : i32
    %c0_i32_1 = arith.constant 0 : i32
    return %c0_i32, %c0_i32_0 : i32, i32
  }
  func.func @transform_3(%arg0: i32) -> (i32, i32) {
    %c0_i32 = arith.constant 0 : i32
    %c0_i32_0 = arith.constant 0 : i32
    %c0_i32_1 = arith.constant 0 : i32
    return %c0_i32, %c0_i32_0 : i32, i32
  }
  func.func @transform_4(%arg0: i32) -> (i32, i32) {
    %c0_i32 = arith.constant 0 : i32
    %c0_i32_0 = arith.constant 0 : i32
    %c0_i32_1 = arith.constant 0 : i32
    return %c0_i32, %c0_i32_0 : i32, i32
  }
  func.func @transform_5(%arg0: i32) -> (i32, i32) {
    %c0_i32 = arith.constant 0 : i32
    %c0_i32_0 = arith.constant 0 : i32
    %c0_i32_1 = arith.constant 0 : i32
    return %c0_i32, %c0_i32_0 : i32, i32
  }
  func.func @transform_6(%arg0: i32) -> (i32, i32) {
    %c0_i32 = arith.constant 0 : i32
    %c0_i32_0 = arith.constant 0 : i32
    return %c0_i32, %arg0 : i32, i32
  }
}

</mosaic_0001>

<llo_original>
// kernel: tpu_custom_call.1
$region0: #{tpu_custom_call.1}
  #allocation0 [shape = 'u32[]', space=smem, size = 0x4, offset = 0x4, fixed_abs, tag = 'smem constant byte address 0x4 - core index']
  #allocation1 [shape = 'u32[144,128]{1,0:T(1,128)}', space=vmem, size = 0x12000, scoped, tag = 'internal scratch']
  %s0 = inlined_call_operand.vmem [shape: f32[4,384], index: 0, kind: input, shape index: {}]
  %s1 = inlined_call_operand.vmem [shape: bf16[6,384], index: 1, kind: input, shape index: {}]
  %s2 = inlined_call_operand.vmem [shape: bf16[32,24], index: 2, kind: input, shape index: {}]
  %s3 = inlined_call_operand.vmem [shape: f32[32,1], index: 3, kind: input, shape index: {}]
  %s4 = inlined_call_operand.vmem [shape: bf16[4,32], index: 4, kind: input, shape index: {}]
  %s5 = inlined_call_operand.vmem [shape: f32[4,1], index: 5, kind: input, shape index: {}]
  %s6 = inlined_call_operand.hbm [shape: f32[5,384], index: 6, kind: output, shape index: {}]
  %s7 = sld [smem:[#allocation0]]
  $region57: #{tpu_custom_call.1} parent=0
    _
  %s9 = ssub.s32 1, %s7
  %s10 = scalar_select 0, %s9, %s7
  $region1: #{tpu_custom_call.1} parent=0
    #allocation2 [shape = 'u8[8192]{0}', space=vmem, size = 0x2000, scoped, tag = 'output window, operand 0']
    #allocation3 [shape = 's32[2]{0}', space=sflag, size = 0x8, scoped, tag = 'scoped memory for tpu_custom_call.1']
    %11 = vsyncpa [#allocation3], 0
    %s12 = scalar_lea.sflag [#allocation3], 1
    %13 = vsyncpa %s12, 0
    loop: start=0, step=1, limit=5
    $region2: #{tpu_custom_call.1} parent=1 // loop_pre_header
      _
    $region3: #{tpu_custom_call.1} parent=1 // loop_header
      %s15 = sphi 0, %s19
      %p16 = scmp.ge.s32.totalorder %s15, 5
      %s25 = sphi 0, %s27
      %s28 = sphi 0, %s25
      %s29 = sphi 0, %s28
      %s45 = sphi 0, %s29
      %s51 = sphi 0, %s53
      %s54 = sphi 0, %s51
      %s55 = sphi 0, %s54
      %s71 = sphi 0, %s55
      %s75 = sphi 0, %s75
      %s77 = sphi 0, %s75
      %s78 = sphi 0, %s77
      %s92 = sphi 0, %s78
      %s96 = sphi 0, %s96
      %s98 = sphi 0, %s96
      %s99 = sphi 0, %s98
      %s113 = sphi 0, %s99
      %s117 = sphi 0, %s117
      %s119 = sphi 0, %s117
      %s120 = sphi 0, %s119
      %s134 = sphi 0, %s120
      %s138 = sphi 0, %s138
      %s140 = sphi 0, %s138
      %s141 = sphi 0, %s140
      %s155 = sphi 0, %s141
      %s161 = sphi 0, %s163
      %s164 = sphi 0, %s161
      %s165 = sphi 0, %s164
      %s181 = sphi 0, %s165
    $region4: #{tpu_custom_call.1} parent=1 // loop_header_branch
      %18 = sbr.rel (%p16) target = $region8
    $region5: #{tpu_custom_call.1} parent=1 // loop_body
      %s20 = ssub.s32 %s15, 1
      %s21 = ssub.s32 %s15, 2
      %s22 = sadd.s32 %s15, 1
      %s23 = ssub.s32 %s15, %s22
      %p24 = scmp.eq.s32.totalorder %s23, 0
      %s26 = sadd.s32 %s25, 1
      %s27 = scalar_select %p24, %s25, %s26
      %p30 = pneg %p24
      %p31 = scmp.eq.s32.totalorder %s15, 2
      %p32 = por %p30, %p31
      %p33 = scmp.ne.s32.totalorder %s25, %s28
      %p34 = scmp.eq.s32.totalorder %s15, 0
      %p35 = por %p33, %p34
      %p36 = scmp.ne.s32.totalorder %s25, %s28
      %p37 = scmp.eq.s32.totalorder %s20, 2
      %p38 = por %p36, %p37
      %p39 = scmp.ne.s32.totalorder %s28, %s29
      %p40 = scmp.eq.s32.totalorder %s20, 0
      %p41 = por %p39, %p40
      %p42 = scmp.ne.s32.totalorder %s28, %s29
      %p43 = scmp.eq.s32.totalorder %s21, 2
      %p44 = por %p42, %p43
      %p46 = scmp.ne.s32.totalorder %s29, %s45
      %p47 = scmp.eq.s32.totalorder %s21, 0
      %p48 = por %p46, %p47
      %s49 = ssub.s32 %s15, %s22
      %p50 = scmp.eq.s32.totalorder %s49, 0
      %s52 = sadd.s32 %s51, 1
      %s53 = scalar_select %p50, %s51, %s52
      %p56 = pneg %p50
      %p57 = scmp.eq.s32.totalorder %s15, 2
      %p58 = por %p56, %p57
      %p59 = scmp.ne.s32.totalorder %s51, %s54
      %p60 = scmp.eq.s32.totalorder %s15, 0
      %p61 = por %p59, %p60
      %p62 = scmp.ne.s32.totalorder %s51, %s54
      %p63 = scmp.eq.s32.totalorder %s20, 2
      %p64 = por %p62, %p63
      %p65 = scmp.ne.s32.totalorder %s54, %s55
      %p66 = scmp.eq.s32.totalorder %s20, 0
      %p67 = por %p65, %p66
      %p68 = scmp.ne.s32.totalorder %s54, %s55
      %p69 = scmp.eq.s32.totalorder %s21, 2
      %p70 = por %p68, %p69
      %p72 = scmp.ne.s32.totalorder %s55, %s71
      %p73 = scmp.eq.s32.totalorder %s21, 0
      %p74 = por %p72, %p73
      %s76 = sadd.s32 %s75, 1
      %p79 = scmp.eq.s32.totalorder %s15, 2
      %p80 = scmp.ne.s32.totalorder %s75, %s77
      %p81 = scmp.eq.s32.totalorder %s15, 0
      %p82 = por %p80, %p81
      %p83 = scmp.ne.s32.totalorder %s75, %s77
      %p84 = scmp.eq.s32.totalorder %s20, 2
      %p85 = por %p83, %p84
      %p86 = scmp.ne.s32.totalorder %s77, %s78
      %p87 = scmp.eq.s32.totalorder %s20, 0
      %p88 = por %p86, %p87
      %p89 = scmp.ne.s32.totalorder %s77, %s78
      %p90 = scmp.eq.s32.totalorder %s21, 2
      %p91 = por %p89, %p90
      %p93 = scmp.ne.s32.totalorder %s78, %s92
      %p94 = scmp.eq.s32.totalorder %s21, 0
      %p95 = por %p93, %p94
      %s97 = sadd.s32 %s96, 1
      %p100 = scmp.eq.s32.totalorder %s15, 2
      %p101 = scmp.ne.s32.totalorder %s96, %s98
      %p102 = scmp.eq.s32.totalorder %s15, 0
      %p103 = por %p101, %p102
      %p104 = scmp.ne.s32.totalorder %s96, %s98
      %p105 = scmp.eq.s32.totalorder %s20, 2
      %p106 = por %p104, %p105
      %p107 = scmp.ne.s32.totalorder %s98, %s99
      %p108 = scmp.eq.s32.totalorder %s20, 0
      %p109 = por %p107, %p108
      %p110 = scmp.ne.s32.totalorder %s98, %s99
      %p111 = scmp.eq.s32.totalorder %s21, 2
      %p112 = por %p110, %p111
      %p114 = scmp.ne.s32.totalorder %s99, %s113
      %p115 = scmp.eq.s32.totalorder %s21, 0
      %p116 = por %p114, %p115
      %s118 = sadd.s32 %s117, 1
      %p121 = scmp.eq.s32.totalorder %s15, 2
      %p122 = scmp.ne.s32.totalorder %s117, %s119
      %p123 = scmp.eq.s32.totalorder %s15, 0
      %p124 = por %p122, %p123
      %p125 = scmp.ne.s32.totalorder %s117, %s119
      %p126 = scmp.eq.s32.totalorder %s20, 2
      %p127 = por %p125, %p126
      %p128 = scmp.ne.s32.totalorder %s119, %s120
      %p129 = scmp.eq.s32.totalorder %s20, 0
      %p130 = por %p128, %p129
      %p131 = scmp.ne.s32.totalorder %s119, %s120
      %p132 = scmp.eq.s32.totalorder %s21, 2
      %p133 = por %p131, %p132
      %p135 = scmp.ne.s32.totalorder %s120, %s134
      %p136 = scmp.eq.s32.totalorder %s21, 0
      %p137 = por %p135, %p136
      %s139 = sadd.s32 %s138, 1
      %p142 = scmp.eq.s32.totalorder %s15, 2
      %p143 = scmp.ne.s32.totalorder %s138, %s140
      %p144 = scmp.eq.s32.totalorder %s15, 0
      %p145 = por %p143, %p144
      %p146 = scmp.ne.s32.totalorder %s138, %s140
      %p147 = scmp.eq.s32.totalorder %s20, 2
      %p148 = por %p146, %p147
      %p149 = scmp.ne.s32.totalorder %s140, %s141
      %p150 = scmp.eq.s32.totalorder %s20, 0
      %p151 = por %p149, %p150
      %p152 = scmp.ne.s32.totalorder %s140, %s141
      %p153 = scmp.eq.s32.totalorder %s21, 2
      %p154 = por %p152, %p153
      %p156 = scmp.ne.s32.totalorder %s141, %s155
      %p157 = scmp.eq.s32.totalorder %s21, 0
      %p158 = por %p156, %p157
      %s159 = ssub.s32 %s15, %s22
      %p160 = scmp.eq.s32.totalorder %s159, 0
      %s162 = sadd.s32 %s161, 1
      %s163 = scalar_select %p160, %s161, %s162
      %p166 = pneg %p160
      %p167 = scmp.eq.s32.totalorder %s15, 2
      %p168 = por %p166, %p167
      %p169 = scmp.ne.s32.totalorder %s161, %s164
      %p170 = scmp.eq.s32.totalorder %s15, 0
      %p171 = por %p169, %p170
      %p172 = scmp.ne.s32.totalorder %s161, %s164
      %p173 = scmp.eq.s32.totalorder %s20, 2
      %p174 = por %p172, %p173
      %p175 = scmp.ne.s32.totalorder %s164, %s165
      %p176 = scmp.eq.s32.totalorder %s20, 0
      %p177 = por %p175, %p176
      %p178 = scmp.ne.s32.totalorder %s164, %s165
      %p179 = scmp.eq.s32.totalorder %s21, 2
      %p180 = por %p178, %p179
      %p182 = scmp.ne.s32.totalorder %s165, %s181
      %p183 = scmp.eq.s32.totalorder %s21, 0
      %p184 = por %p182, %p183
      %p185 = scmp.le.s32.totalorder 1, %s15
      %p186 = scmp.lt.s32.totalorder %s15, 4
      %p187 = pnand %p185, %p186
      %p188 = pneg %p187
      // Predicated region
      $region9: #{tpu_custom_call.1} parent=5 // pred_check
        _
      $region10: #{tpu_custom_call.1} parent=5 // pred_check_branch
        %190 = sbr.rel (%p187) target = $region12
      $region11: #{tpu_custom_call.1} parent=5 // pred_region
        %s191 = ssub.s32 %s15, 1
        // Predicated region
        $region13: #{tpu_custom_call.1} parent=11 // pred_check
          %p192 = pneg %p88
        $region14: #{tpu_custom_call.1} parent=11 // pred_check_branch
          %194 = sbr.rel (%p192) target = $region16
        $region15: #{tpu_custom_call.1} parent=11 // pred_region
          _
        $region16: #{tpu_custom_call.1} parent=11 // pred_fallthru
          _
        // Predicated region
        $region17: #{tpu_custom_call.1} parent=11 // pred_check
          %p195 = pneg %p109
        $region18: #{tpu_custom_call.1} parent=11 // pred_check_branch
          %197 = sbr.rel (%p195) target = $region20
        $region19: #{tpu_custom_call.1} parent=11 // pred_region
          _
        $region20: #{tpu_custom_call.1} parent=11 // pred_fallthru
          _
        // Predicated region
        $region21: #{tpu_custom_call.1} parent=11 // pred_check
          %p198 = pneg %p130
        $region22: #{tpu_custom_call.1} parent=11 // pred_check_branch
          %200 = sbr.rel (%p198) target = $region24
        $region23: #{tpu_custom_call.1} parent=11 // pred_region
          _
        $region24: #{tpu_custom_call.1} parent=11 // pred_fallthru
          _
        // Predicated region
        $region25: #{tpu_custom_call.1} parent=11 // pred_check
          %p201 = pneg %p151
        $region26: #{tpu_custom_call.1} parent=11 // pred_check_branch
          %203 = sbr.rel (%p201) target = $region28
        $region27: #{tpu_custom_call.1} parent=11 // pred_region
          _
        $region28: #{tpu_custom_call.1} parent=11 // pred_fallthru
          _
      $region12: #{tpu_custom_call.1} parent=5 // pred_fallthru
        _
      %p204 = scmp.lt.s32.totalorder %s15, 3
      // Predicated region
      $region29: #{tpu_custom_call.1} parent=5 // pred_check
        %p205 = pneg %p204
      $region30: #{tpu_custom_call.1} parent=5 // pred_check_branch
        %207 = sbr.rel (%p205) target = $region32
      $region31: #{tpu_custom_call.1} parent=5 // pred_region
        // Predicated region
        $region33: #{tpu_custom_call.1} parent=31 // pred_check
          %p208 = pneg %p35
        $region34: #{tpu_custom_call.1} parent=31 // pred_check_branch
          %210 = sbr.rel (%p208) target = $region36
        $region35: #{tpu_custom_call.1} parent=31 // pred_region
          %p211 = scmp.lt.s32.totalorder %s15, 2
          %s212 = scalar_select %p211, %s15, 2
          %s213 = smul.addr %s212, 4
          %s214 = scalar_lea.vmem %s0, %s213
        $region36: #{tpu_custom_call.1} parent=31 // pred_fallthru
          _
        // Predicated region
        $region37: #{tpu_custom_call.1} parent=31 // pred_check
          %p215 = pneg %p61
        $region38: #{tpu_custom_call.1} parent=31 // pred_check_branch
          %217 = sbr.rel (%p215) target = $region40
        $region39: #{tpu_custom_call.1} parent=31 // pred_region
          %p218 = scmp.lt.s32.totalorder %s15, 2
          %s219 = scalar_select %p218, %s15, 2
          %s220 = smul.addr %s219, 4
          %s221 = scalar_lea.vmem %s1, %s220
        $region40: #{tpu_custom_call.1} parent=31 // pred_fallthru
          _
      $region32: #{tpu_custom_call.1} parent=5 // pred_fallthru
        _
      %p222 = scmp.le.s32.totalorder 1, %s15
      %p223 = scmp.lt.s32.totalorder %s15, 4
      %p224 = pnand %p222, %p223
      %p225 = pneg %p224
      // Predicated region
      $region41: #{tpu_custom_call.1} parent=5 // pred_check
        _
      $region42: #{tpu_custom_call.1} parent=5 // pred_check_branch
        %227 = sbr.rel (%p224) target = $region44
      $region43: #{tpu_custom_call.1} parent=5 // pred_region
        %s228 = ssub.s32 %s15, 1
        %p229 = scmp.lt.s32.totalorder %s20, 2
        %s230 = scalar_select %p229, %s20, 2
        %s231 = smul.addr %s230, 4
        %s232 = scalar_lea.vmem %s0, %s231
        %p233 = pneg %p41
        %p234 = pneg %p38
        %p235 = scmp.lt.s32.totalorder %s20, 2
        %s236 = scalar_select %p235, %s20, 2
        %s237 = smul.addr %s236, 4
        %s238 = scalar_lea.vmem %s1, %s237
        %p239 = pneg %p67
        %p240 = pneg %p64
        %p241 = pneg %p88
        %p242 = pneg %p85
        %p243 = pneg %p109
        %p244 = pneg %p106
        %p245 = pneg %p130
        %p246 = pneg %p127
        %p247 = pneg %p151
        %p248 = pneg %p148
        %p249 = pneg %p177
        %p250 = pneg %p174
        %s251 = sand.u32 %s164, 1
        %s252 = scalar_lea.sflag [#allocation3], %s251
        %s253 = sand.u32 %s164, 1
        %s254 = smul.addr %s253, 8
        %s255 = scalar_lea.vmem [#allocation2], %s254
        %p256 = scmp.lt.s32.totalorder %s20, 2
        %s257 = scalar_select %p256, %s20, 2
        %s258 = smul.addr %s257, 4
        %s259 = scalar_lea.vmem %s0, %s258
        %p260 = scmp.lt.s32.totalorder %s20, 2
        %s261 = scalar_select %p260, %s20, 2
        %s262 = smul.addr %s261, 4
        %s263 = scalar_lea.vmem %s1, %s262
        %v265 = vld [vmem:[%s259] sm:$0xf]
        %v266 = vld [vmem:[%s263] sm:$0x7]
        %v267 = vunpack.c.l.bf16 %v266
        %v268 = vand.u32 2147483647, %v265
        %vm269 = vcmp.le.f32.partialorder %v268, 0.7853982
        %vm270 = vcmp.lt.s32.totalorder %v265, 0
        %v271 = vand.u32 %v265, 2139095040
        %v272 = vshrl.u32 %v271, 23
        %v273 = vsub.s32 %v272, 127
        %v274 = vand.u32 2147483647, %v265
        %v275 = vand.u32 %v274, 8388607
        %v276 = vor.u32 %v275, 8388608
        %v277 = vsub.s32 0, %v276
        %v278 = vadd.s32 %v273, 1
        %vm279 = vcmp.gt.s32.totalorder %v278, 0
        %v280 = vsel %vm279, %v278, 0
        %v281 = vshrl.u32 %v280, 5
        %v282 = vand.u32 %v280, 31
        %v283 = vsub.s32 32, %v282
        %v284 = vshrl.u32 683565275, %v283
        %v285 = vshll.u32 683565275, %v282
        %v286 = vshrl.u32 2475754826, %v283
        %v287 = vor.u32 %v285, %v286
        %v288 = vshll.u32 2475754826, %v282
        %v289 = vshrl.u32 2131351028, %v283
        %v290 = vor.u32 %v288, %v289
        %v291 = vshll.u32 2131351028, %v282
        %v292 = vshrl.u32 2102212464, %v283
        %v293 = vor.u32 %v291, %v292
        %v294 = vshll.u32 2102212464, %v282
        %v295 = vshrl.u32 920167782, %v283
        %v296 = vor.u32 %v294, %v295
        %v297 = vshll.u32 920167782, %v282
        %v298 = vshrl.u32 1326507024, %v283
        %v299 = vor.u32 %v297, %v298
        %vm300 = vcmp.lt.s32.totalorder %v281, 1
        %vm301 = vcmp.lt.s32.totalorder %v281, 2
        %vm302 = vcmp.lt.s32.totalorder %v281, 3
        %vm303 = vcmp.lt.s32.totalorder %v281, 4
        %v304 = vsel %vm300, %v284, %v287
        %v305 = vsel %vm303, %v293, 2102212464
        %v306 = vsel %vm302, %v290, %v305
        %v307 = vsel %vm301, %v304, %v306
        %v308 = vsel %vm300, %v287, %v290
        %v309 = vsel %vm303, %v296, 920167782
        %v310 = vsel %vm302, %v293, %v309
        %v311 = vsel %vm301, %v308, %v310
        %v312 = vsel %vm300, %v290, %v293
        %v313 = vsel %vm303, %v299, 1326507024
        %v314 = vsel %vm302, %v296, %v313
        %v315 = vsel %vm301, %v312, %v314
        %v316 = vshll.u32 %v276, 8
        %v317 = vmul.u32.u64.compose %v316, %v315
        %v318 = vextract.low.u32 %v317
        %v319 = vextract.high.u32 %v317
        %v320 = vmul.u32.u64.compose %v316, %v311
        %v321 = vextract.low.u32 %v320
        %v322 = vextract.high.u32 %v320
        %v323 = vmul.u32 %v316, %v307
        %v324 = vadd.s32 %v319, %v321
        %vm325 = vc.u32 %v319, %v321
        %v326 = vadd.s32 %v322, 1
        %v327 = vsel %vm325, %v326, %v322
        %v328 = vadd.s32 %v323, %v327
        %v329 = vadd.s32 %v328, 536870912
        %v330 = vshrl.u32 %v329, 30
        %v331 = vshll.u32 %v330, 30
        %v332 = vsub.s32 %v328, %v331
        %vm333 = vcmp.lt.s32.totalorder %v332, 0
        %v334 = vsub.s32 0, %v332
        %v335 = vsel %vm333, %v334, %v332
        %v336 = vclz %v335
        %v337 = vsub.s32 %v336, 2
        %vm338 = vcmp.gt.s32.totalorder 0, %v337
        %v339 = vsel %vm338, 0, %v337
        %v340 = vsub.s32 32, %v339
        %v341 = vshll.u32 %v332, %v339
        %v342 = vshrl.u32 %v324, %v340
        %v343 = vor.u32 %v341, %v342
        %v344 = vsub.s32 4294967266, %v339
        %v345 = vadd.s32 %v344, 127
        %v346 = vshll.u32 %v345, 23
        %v347 = vor.u32 4788187, %v346
        %v348 = vand.u32 2147483647, %v347
        %v350 = vcvt.s32.f32 %v343
        %v351 = vmul.f32 %v350, %v348
        %v352 = vxor.u32 %v351, 2147483648
        %v353 = vsel %vm270, %v352, %v351
        %v354 = vsub.s32 4, %v330
        %v355 = vsel %vm270, %v354, %v330
        %v356 = vsel %vm269, %v265, %v353
        %v357 = vsel %vm269, 0, %v355
        %v358 = vcosq.f32.pop %v356
        %v359 = vsinq.f32.pop %v356
        %vm360 = vweird.f32 %v265
        %v361 = vadd.s32 %v357, 3
        %v362 = vand.u32 %v361, 3
        %vm363 = vcmp.lt.s32.totalorder %v362, 2
        %vm364 = vcmp.eq.s32.totalorder %v362, 0
        %v365 = vxor.u32 %v359, 2147483648
        %v366 = vsel %vm364, %v358, %v365
        %vm367 = vcmp.eq.s32.totalorder %v362, 2
        %v368 = vxor.u32 %v358, 2147483648
        %v369 = vsel %vm367, %v368, %v359
        %v370 = vsel %vm363, %v366, %v369
        %v371 = vsel %vm360, nan, %v370
        %v372 = vand.u32 2147483647, %v265
        %vm373 = vcmp.le.f32.partialorder %v372, 0.7853982
        %vm374 = vcmp.lt.s32.totalorder %v265, 0
        %v375 = vand.u32 %v265, 2139095040
        %v376 = vshrl.u32 %v375, 23
        %v377 = vsub.s32 %v376, 127
        %v378 = vand.u32 2147483647, %v265
        %v379 = vand.u32 %v378, 8388607
        %v380 = vor.u32 %v379, 8388608
        %v381 = vsub.s32 0, %v380
        %v382 = vadd.s32 %v377, 1
        %vm383 = vcmp.gt.s32.totalorder %v382, 0
        %v384 = vsel %vm383, %v382, 0
        %v385 = vshrl.u32 %v384, 5
        %v386 = vand.u32 %v384, 31
        %v387 = vsub.s32 32, %v386
        %v388 = vshrl.u32 683565275, %v387
        %v389 = vshll.u32 683565275, %v386
        %v390 = vshrl.u32 2475754826, %v387
        %v391 = vor.u32 %v389, %v390
        %v392 = vshll.u32 2475754826, %v386
        %v393 = vshrl.u32 2131351028, %v387
        %v394 = vor.u32 %v392, %v393
        %v395 = vshll.u32 2131351028, %v386
        %v396 = vshrl.u32 2102212464, %v387
        %v397 = vor.u32 %v395, %v396
        %v398 = vshll.u32 2102212464, %v386
        %v399 = vshrl.u32 920167782, %v387
        %v400 = vor.u32 %v398, %v399
        %v401 = vshll.u32 920167782, %v386
        %v402 = vshrl.u32 1326507024, %v387
        %v403 = vor.u32 %v401, %v402
        %vm404 = vcmp.lt.s32.totalorder %v385, 1
        %vm405 = vcmp.lt.s32.totalorder %v385, 2
        %vm406 = vcmp.lt.s32.totalorder %v385, 3
        %vm407 = vcmp.lt.s32.totalorder %v385, 4
        %v408 = vsel %vm404, %v388, %v391
        %v409 = vsel %vm407, %v397, 2102212464
        %v410 = vsel %vm406, %v394, %v409
        %v411 = vsel %vm405, %v408, %v410
        %v412 = vsel %vm404, %v391, %v394
        %v413 = vsel %vm407, %v400, 920167782
        %v414 = vsel %vm406, %v397, %v413
        %v415 = vsel %vm405, %v412, %v414
        %v416 = vsel %vm404, %v394, %v397
        %v417 = vsel %vm407, %v403, 1326507024
        %v418 = vsel %vm406, %v400, %v417
        %v419 = vsel %vm405, %v416, %v418
        %v420 = vshll.u32 %v380, 8
        %v421 = vmul.u32.u64.compose %v420, %v419
        %v422 = vextract.low.u32 %v421
        %v423 = vextract.high.u32 %v421
        %v424 = vmul.u32.u64.compose %v420, %v415
        %v425 = vextract.low.u32 %v424
        %v426 = vextract.high.u32 %v424
        %v427 = vmul.u32 %v420, %v411
        %v428 = vadd.s32 %v423, %v425
        %vm429 = vc.u32 %v423, %v425
        %v430 = vadd.s32 %v426, 1
        %v431 = vsel %vm429, %v430, %v426
        %v432 = vadd.s32 %v427, %v431
        %v433 = vadd.s32 %v432, 536870912
        %v434 = vshrl.u32 %v433, 30
        %v435 = vshll.u32 %v434, 30
        %v436 = vsub.s32 %v432, %v435
        %vm437 = vcmp.lt.s32.totalorder %v436, 0
        %v438 = vsub.s32 0, %v436
        %v439 = vsel %vm437, %v438, %v436
        %v440 = vclz %v439
        %v441 = vsub.s32 %v440, 2
        %vm442 = vcmp.gt.s32.totalorder 0, %v441
        %v443 = vsel %vm442, 0, %v441
        %v444 = vsub.s32 32, %v443
        %v445 = vshll.u32 %v436, %v443
        %v446 = vshrl.u32 %v428, %v444
        %v447 = vor.u32 %v445, %v446
        %v448 = vsub.s32 4294967266, %v443
        %v449 = vadd.s32 %v448, 127
        %v450 = vshll.u32 %v449, 23
        %v451 = vor.u32 4788187, %v450
        %v452 = vand.u32 2147483647, %v451
        %v454 = vcvt.s32.f32 %v447
        %v455 = vmul.f32 %v454, %v452
        %v456 = vxor.u32 %v455, 2147483648
        %v457 = vsel %vm374, %v456, %v455
        %v458 = vsub.s32 4, %v434
        %v459 = vsel %vm374, %v458, %v434
        %v460 = vsel %vm373, %v265, %v457
        %v461 = vsel %vm373, 0, %v459
        %v462 = vcosq.f32.pop %v460
        %v463 = vsinq.f32.pop %v460
        %vm464 = vweird.f32 %v265
        %v465 = vand.u32 %v461, 3
        %vm466 = vcmp.lt.s32.totalorder %v465, 2
        %vm467 = vcmp.eq.s32.totalorder %v465, 0
        %v468 = vxor.u32 %v463, 2147483648
        %v469 = vsel %vm467, %v462, %v468
        %vm470 = vcmp.eq.s32.totalorder %v465, 2
        %v471 = vxor.u32 %v462, 2147483648
        %v472 = vsel %vm470, %v471, %v463
        %v473 = vsel %vm466, %v469, %v472
        %v474 = vsel %vm464, nan, %v473
        %v475 = vmul.f32 %v265, 3.3333333
        %v476 = vand.u32 2147483647, %v475
        %vm477 = vcmp.le.f32.partialorder %v476, 0.7853982
        %vm478 = vcmp.lt.s32.totalorder %v475, 0
        %v479 = vand.u32 %v475, 2139095040
        %v480 = vshrl.u32 %v479, 23
        %v481 = vsub.s32 %v480, 127
        %v482 = vand.u32 2147483647, %v475
        %v483 = vand.u32 %v482, 8388607
        %v484 = vor.u32 %v483, 8388608
        %v485 = vsub.s32 0, %v484
        %v486 = vadd.s32 %v481, 1
        %vm487 = vcmp.gt.s32.totalorder %v486, 0
        %v488 = vsel %vm487, %v486, 0
        %v489 = vshrl.u32 %v488, 5
        %v490 = vand.u32 %v488, 31
        %v491 = vsub.s32 32, %v490
        %v492 = vshrl.u32 683565275, %v491
        %v493 = vshll.u32 683565275, %v490
        %v494 = vshrl.u32 2475754826, %v491
        %v495 = vor.u32 %v493, %v494
        %v496 = vshll.u32 2475754826, %v490
        %v497 = vshrl.u32 2131351028, %v491
        %v498 = vor.u32 %v496, %v497
        %v499 = vshll.u32 2131351028, %v490
        %v500 = vshrl.u32 2102212464, %v491
        %v501 = vor.u32 %v499, %v500
        %v502 = vshll.u32 2102212464, %v490
        %v503 = vshrl.u32 920167782, %v491
        %v504 = vor.u32 %v502, %v503
        %v505 = vshll.u32 920167782, %v490
        %v506 = vshrl.u32 1326507024, %v491
        %v507 = vor.u32 %v505, %v506
        %vm508 = vcmp.lt.s32.totalorder %v489, 1
        %vm509 = vcmp.lt.s32.totalorder %v489, 2
        %vm510 = vcmp.lt.s32.totalorder %v489, 3
        %vm511 = vcmp.lt.s32.totalorder %v489, 4
        %v512 = vsel %vm508, %v492, %v495
        %v513 = vsel %vm511, %v501, 2102212464
        %v514 = vsel %vm510, %v498, %v513
        %v515 = vsel %vm509, %v512, %v514
        %v516 = vsel %vm508, %v495, %v498
        %v517 = vsel %vm511, %v504, 920167782
        %v518 = vsel %vm510, %v501, %v517
        %v519 = vsel %vm509, %v516, %v518
        %v520 = vsel %vm508, %v498, %v501
        %v521 = vsel %vm511, %v507, 1326507024
        %v522 = vsel %vm510, %v504, %v521
        %v523 = vsel %vm509, %v520, %v522
        %v524 = vshll.u32 %v484, 8
        %v525 = vmul.u32.u64.compose %v524, %v523
        %v526 = vextract.low.u32 %v525
        %v527 = vextract.high.u32 %v525
        %v528 = vmul.u32.u64.compose %v524, %v519
        %v529 = vextract.low.u32 %v528
        %v530 = vextract.high.u32 %v528
        %v531 = vmul.u32 %v524, %v515
        %v532 = vadd.s32 %v527, %v529
        %vm533 = vc.u32 %v527, %v529
        %v534 = vadd.s32 %v530, 1
        %v535 = vsel %vm533, %v534, %v530
        %v536 = vadd.s32 %v531, %v535
        %v537 = vadd.s32 %v536, 536870912
        %v538 = vshrl.u32 %v537, 30
        %v539 = vshll.u32 %v538, 30
        %v540 = vsub.s32 %v536, %v539
        %vm541 = vcmp.lt.s32.totalorder %v540, 0
        %v542 = vsub.s32 0, %v540
        %v543 = vsel %vm541, %v542, %v540
        %v544 = vclz %v543
        %v545 = vsub.s32 %v544, 2
        %vm546 = vcmp.gt.s32.totalorder 0, %v545
        %v547 = vsel %vm546, 0, %v545
        %v548 = vsub.s32 32, %v547
        %v549 = vshll.u32 %v540, %v547
        %v550 = vshrl.u32 %v532, %v548
        %v551 = vor.u32 %v549, %v550
        %v552 = vsub.s32 4294967266, %v547
        %v553 = vadd.s32 %v552, 127
        %v554 = vshll.u32 %v553, 23
        %v555 = vor.u32 4788187, %v554
        %v556 = vand.u32 2147483647, %v555
        %v558 = vcvt.s32.f32 %v551
        %v559 = vmul.f32 %v558, %v556
        %v560 = vxor.u32 %v559, 2147483648
        %v561 = vsel %vm478, %v560, %v559
        %v562 = vsub.s32 4, %v538
        %v563 = vsel %vm478, %v562, %v538
        %v564 = vsel %vm477, %v475, %v561
        %v565 = vsel %vm477, 0, %v563
        %v566 = vcosq.f32.pop %v564
        %v567 = vsinq.f32.pop %v564
        %vm568 = vweird.f32 %v475
        %v569 = vadd.s32 %v565, 3
        %v570 = vand.u32 %v569, 3
        %vm571 = vcmp.lt.s32.totalorder %v570, 2
        %vm572 = vcmp.eq.s32.totalorder %v570, 0
        %v573 = vxor.u32 %v567, 2147483648
        %v574 = vsel %vm572, %v566, %v573
        %vm575 = vcmp.eq.s32.totalorder %v570, 2
        %v576 = vxor.u32 %v566, 2147483648
        %v577 = vsel %vm575, %v576, %v567
        %v578 = vsel %vm571, %v574, %v577
        %v579 = vsel %vm568, nan, %v578
        %v580 = vand.u32 2147483647, %v475
        %vm581 = vcmp.le.f32.partialorder %v580, 0.7853982
        %vm582 = vcmp.lt.s32.totalorder %v475, 0
        %v583 = vand.u32 %v475, 2139095040
        %v584 = vshrl.u32 %v583, 23
        %v585 = vsub.s32 %v584, 127
        %v586 = vand.u32 2147483647, %v475
        %v587 = vand.u32 %v586, 8388607
        %v588 = vor.u32 %v587, 8388608
        %v589 = vsub.s32 0, %v588
        %v590 = vadd.s32 %v585, 1
        %vm591 = vcmp.gt.s32.totalorder %v590, 0
        %v592 = vsel %vm591, %v590, 0
        %v593 = vshrl.u32 %v592, 5
        %v594 = vand.u32 %v592, 31
        %v595 = vsub.s32 32, %v594
        %v596 = vshrl.u32 683565275, %v595
        %v597 = vshll.u32 683565275, %v594
        %v598 = vshrl.u32 2475754826, %v595
        %v599 = vor.u32 %v597, %v598
        %v600 = vshll.u32 2475754826, %v594
        %v601 = vshrl.u32 2131351028, %v595
        %v602 = vor.u32 %v600, %v601
        %v603 = vshll.u32 2131351028, %v594
        %v604 = vshrl.u32 2102212464, %v595
        %v605 = vor.u32 %v603, %v604
        %v606 = vshll.u32 2102212464, %v594
        %v607 = vshrl.u32 920167782, %v595
        %v608 = vor.u32 %v606, %v607
        %v609 = vshll.u32 920167782, %v594
        %v610 = vshrl.u32 1326507024, %v595
        %v611 = vor.u32 %v609, %v610
        %vm612 = vcmp.lt.s32.totalorder %v593, 1
        %vm613 = vcmp.lt.s32.totalorder %v593, 2
        %vm614 = vcmp.lt.s32.totalorder %v593, 3
        %vm615 = vcmp.lt.s32.totalorder %v593, 4
        %v616 = vsel %vm612, %v596, %v599
        %v617 = vsel %vm615, %v605, 2102212464
        %v618 = vsel %vm614, %v602, %v617
        %v619 = vsel %vm613, %v616, %v618
        %v620 = vsel %vm612, %v599, %v602
        %v621 = vsel %vm615, %v608, 920167782
        %v622 = vsel %vm614, %v605, %v621
        %v623 = vsel %vm613, %v620, %v622
        %v624 = vsel %vm612, %v602, %v605
        %v625 = vsel %vm615, %v611, 1326507024
        %v626 = vsel %vm614, %v608, %v625
        %v627 = vsel %vm613, %v624, %v626
        %v628 = vshll.u32 %v588, 8
        %v629 = vmul.u32.u64.compose %v628, %v627
        %v630 = vextract.low.u32 %v629
        %v631 = vextract.high.u32 %v629
        %v632 = vmul.u32.u64.compose %v628, %v623
        %v633 = vextract.low.u32 %v632
        %v634 = vextract.high.u32 %v632
        %v635 = vmul.u32 %v628, %v619
        %v636 = vadd.s32 %v631, %v633
        %vm637 = vc.u32 %v631, %v633
        %v638 = vadd.s32 %v634, 1
        %v639 = vsel %vm637, %v638, %v634
        %v640 = vadd.s32 %v635, %v639
        %v641 = vadd.s32 %v640, 536870912
        %v642 = vshrl.u32 %v641, 30
        %v643 = vshll.u32 %v642, 30
        %v644 = vsub.s32 %v640, %v643
        %vm645 = vcmp.lt.s32.totalorder %v644, 0
        %v646 = vsub.s32 0, %v644
        %v647 = vsel %vm645, %v646, %v644
        %v648 = vclz %v647
        %v649 = vsub.s32 %v648, 2
        %vm650 = vcmp.gt.s32.totalorder 0, %v649
        %v651 = vsel %vm650, 0, %v649
        %v652 = vsub.s32 32, %v651
        %v653 = vshll.u32 %v644, %v651
        %v654 = vshrl.u32 %v636, %v652
        %v655 = vor.u32 %v653, %v654
        %v656 = vsub.s32 4294967266, %v651
        %v657 = vadd.s32 %v656, 127
        %v658 = vshll.u32 %v657, 23
        %v659 = vor.u32 4788187, %v658
        %v660 = vand.u32 2147483647, %v659
        %v662 = vcvt.s32.f32 %v655
        %v663 = vmul.f32 %v662, %v660
        %v664 = vxor.u32 %v663, 2147483648
        %v665 = vsel %vm582, %v664, %v663
        %v666 = vsub.s32 4, %v642
        %v667 = vsel %vm582, %v666, %v642
        %v668 = vsel %vm581, %v475, %v665
        %v669 = vsel %vm581, 0, %v667
        %v670 = vcosq.f32.pop %v668
        %v671 = vsinq.f32.pop %v668
        %vm672 = vweird.f32 %v475
        %v673 = vand.u32 %v669, 3
        %vm674 = vcmp.lt.s32.totalorder %v673, 2
        %vm675 = vcmp.eq.s32.totalorder %v673, 0
        %v676 = vxor.u32 %v671, 2147483648
        %v677 = vsel %vm675, %v670, %v676
        %vm678 = vcmp.eq.s32.totalorder %v673, 2
        %v679 = vxor.u32 %v670, 2147483648
        %v680 = vsel %vm678, %v679, %v671
        %v681 = vsel %vm674, %v677, %v680
        %v682 = vsel %vm672, nan, %v681
        %v683 = vmul.f32 %v265, 5.6666665
        %v684 = vand.u32 2147483647, %v683
        %vm685 = vcmp.le.f32.partialorder %v684, 0.7853982
        %vm686 = vcmp.lt.s32.totalorder %v683, 0
        %v687 = vand.u32 %v683, 2139095040
        %v688 = vshrl.u32 %v687, 23
        %v689 = vsub.s32 %v688, 127
        %v690 = vand.u32 2147483647, %v683
        %v691 = vand.u32 %v690, 8388607
        %v692 = vor.u32 %v691, 8388608
        %v693 = vsub.s32 0, %v692
        %v694 = vadd.s32 %v689, 1
        %vm695 = vcmp.gt.s32.totalorder %v694, 0
        %v696 = vsel %vm695, %v694, 0
        %v697 = vshrl.u32 %v696, 5
        %v698 = vand.u32 %v696, 31
        %v699 = vsub.s32 32, %v698
        %v700 = vshrl.u32 683565275, %v699
        %v701 = vshll.u32 683565275, %v698
        %v702 = vshrl.u32 2475754826, %v699
        %v703 = vor.u32 %v701, %v702
        %v704 = vshll.u32 2475754826, %v698
        %v705 = vshrl.u32 2131351028, %v699
        %v706 = vor.u32 %v704, %v705
        %v707 = vshll.u32 2131351028, %v698
        %v708 = vshrl.u32 2102212464, %v699
        %v709 = vor.u32 %v707, %v708
        %v710 = vshll.u32 2102212464, %v698
        %v711 = vshrl.u32 920167782, %v699
        %v712 = vor.u32 %v710, %v711
        %v713 = vshll.u32 920167782, %v698
        %v714 = vshrl.u32 1326507024, %v699
        %v715 = vor.u32 %v713, %v714
        %vm716 = vcmp.lt.s32.totalorder %v697, 1
        %vm717 = vcmp.lt.s32.totalorder %v697, 2
        %vm718 = vcmp.lt.s32.totalorder %v697, 3
        %vm719 = vcmp.lt.s32.totalorder %v697, 4
        %v720 = vsel %vm716, %v700, %v703
        %v721 = vsel %vm719, %v709, 2102212464
        %v722 = vsel %vm718, %v706, %v721
        %v723 = vsel %vm717, %v720, %v722
        %v724 = vsel %vm716, %v703, %v706
        %v725 = vsel %vm719, %v712, 920167782
        %v726 = vsel %vm718, %v709, %v725
        %v727 = vsel %vm717, %v724, %v726
        %v728 = vsel %vm716, %v706, %v709
        %v729 = vsel %vm719, %v715, 1326507024
        %v730 = vsel %vm718, %v712, %v729
        %v731 = vsel %vm717, %v728, %v730
        %v732 = vshll.u32 %v692, 8
        %v733 = vmul.u32.u64.compose %v732, %v731
        %v734 = vextract.low.u32 %v733
        %v735 = vextract.high.u32 %v733
        %v736 = vmul.u32.u64.compose %v732, %v727
        %v737 = vextract.low.u32 %v736
        %v738 = vextract.high.u32 %v736
        %v739 = vmul.u32 %v732, %v723
        %v740 = vadd.s32 %v735, %v737
        %vm741 = vc.u32 %v735, %v737
        %v742 = vadd.s32 %v738, 1
        %v743 = vsel %vm741, %v742, %v738
        %v744 = vadd.s32 %v739, %v743
        %v745 = vadd.s32 %v744, 536870912
        %v746 = vshrl.u32 %v745, 30
        %v747 = vshll.u32 %v746, 30
        %v748 = vsub.s32 %v744, %v747
        %vm749 = vcmp.lt.s32.totalorder %v748, 0
        %v750 = vsub.s32 0, %v748
        %v751 = vsel %vm749, %v750, %v748
        %v752 = vclz %v751
        %v753 = vsub.s32 %v752, 2
        %vm754 = vcmp.gt.s32.totalorder 0, %v753
        %v755 = vsel %vm754, 0, %v753
        %v756 = vsub.s32 32, %v755
        %v757 = vshll.u32 %v748, %v755
        %v758 = vshrl.u32 %v740, %v756
        %v759 = vor.u32 %v757, %v758
        %v760 = vsub.s32 4294967266, %v755
        %v761 = vadd.s32 %v760, 127
        %v762 = vshll.u32 %v761, 23
        %v763 = vor.u32 4788187, %v762
        %v764 = vand.u32 2147483647, %v763
        %v766 = vcvt.s32.f32 %v759
        %v767 = vmul.f32 %v766, %v764
        %v768 = vxor.u32 %v767, 2147483648
        %v769 = vsel %vm686, %v768, %v767
        %v770 = vsub.s32 4, %v746
        %v771 = vsel %vm686, %v770, %v746
        %v772 = vsel %vm685, %v683, %v769
        %v773 = vsel %vm685, 0, %v771
        %v774 = vcosq.f32.pop %v772
        %v775 = vsinq.f32.pop %v772
        %vm776 = vweird.f32 %v683
        %v777 = vadd.s32 %v773, 3
        %v778 = vand.u32 %v777, 3
        %vm779 = vcmp.lt.s32.totalorder %v778, 2
        %vm780 = vcmp.eq.s32.totalorder %v778, 0
        %v781 = vxor.u32 %v775, 2147483648
        %v782 = vsel %vm780, %v774, %v781
        %vm783 = vcmp.eq.s32.totalorder %v778, 2
        %v784 = vxor.u32 %v774, 2147483648
        %v785 = vsel %vm783, %v784, %v775
        %v786 = vsel %vm779, %v782, %v785
        %v787 = vsel %vm776, nan, %v786
        %v788 = vand.u32 2147483647, %v683
        %vm789 = vcmp.le.f32.partialorder %v788, 0.7853982
        %vm790 = vcmp.lt.s32.totalorder %v683, 0
        %v791 = vand.u32 %v683, 2139095040
        %v792 = vshrl.u32 %v791, 23
        %v793 = vsub.s32 %v792, 127
        %v794 = vand.u32 2147483647, %v683
        %v795 = vand.u32 %v794, 8388607
        %v796 = vor.u32 %v795, 8388608
        %v797 = vsub.s32 0, %v796
        %v798 = vadd.s32 %v793, 1
        %vm799 = vcmp.gt.s32.totalorder %v798, 0
        %v800 = vsel %vm799, %v798, 0
        %v801 = vshrl.u32 %v800, 5
        %v802 = vand.u32 %v800, 31
        %v803 = vsub.s32 32, %v802
        %v804 = vshrl.u32 683565275, %v803
        %v805 = vshll.u32 683565275, %v802
        %v806 = vshrl.u32 2475754826, %v803
        %v807 = vor.u32 %v805, %v806
        %v808 = vshll.u32 2475754826, %v802
        %v809 = vshrl.u32 2131351028, %v803
        %v810 = vor.u32 %v808, %v809
        %v811 = vshll.u32 2131351028, %v802
        %v812 = vshrl.u32 2102212464, %v803
        %v813 = vor.u32 %v811, %v812
        %v814 = vshll.u32 2102212464, %v802
        %v815 = vshrl.u32 920167782, %v803
        %v816 = vor.u32 %v814, %v815
        %v817 = vshll.u32 920167782, %v802
        %v818 = vshrl.u32 1326507024, %v803
        %v819 = vor.u32 %v817, %v818
        %vm820 = vcmp.lt.s32.totalorder %v801, 1
        %vm821 = vcmp.lt.s32.totalorder %v801, 2
        %vm822 = vcmp.lt.s32.totalorder %v801, 3
        %vm823 = vcmp.lt.s32.totalorder %v801, 4
        %v824 = vsel %vm820, %v804, %v807
        %v825 = vsel %vm823, %v813, 2102212464
        %v826 = vsel %vm822, %v810, %v825
        %v827 = vsel %vm821, %v824, %v826
        %v828 = vsel %vm820, %v807, %v810
        %v829 = vsel %vm823, %v816, 920167782
        %v830 = vsel %vm822, %v813, %v829
        %v831 = vsel %vm821, %v828, %v830
        %v832 = vsel %vm820, %v810, %v813
        %v833 = vsel %vm823, %v819, 1326507024
        %v834 = vsel %vm822, %v816, %v833
        %v835 = vsel %vm821, %v832, %v834
        %v836 = vshll.u32 %v796, 8
        %v837 = vmul.u32.u64.compose %v836, %v835
        %v838 = vextract.low.u32 %v837
        %v839 = vextract.high.u32 %v837
        %v840 = vmul.u32.u64.compose %v836, %v831
        %v841 = vextract.low.u32 %v840
        %v842 = vextract.high.u32 %v840
        %v843 = vmul.u32 %v836, %v827
        %v844 = vadd.s32 %v839, %v841
        %vm845 = vc.u32 %v839, %v841
        %v846 = vadd.s32 %v842, 1
        %v847 = vsel %vm845, %v846, %v842
        %v848 = vadd.s32 %v843, %v847
        %v849 = vadd.s32 %v848, 536870912
        %v850 = vshrl.u32 %v849, 30
        %v851 = vshll.u32 %v850, 30
        %v852 = vsub.s32 %v848, %v851
        %vm853 = vcmp.lt.s32.totalorder %v852, 0
        %v854 = vsub.s32 0, %v852
        %v855 = vsel %vm853, %v854, %v852
        %v856 = vclz %v855
        %v857 = vsub.s32 %v856, 2
        %vm858 = vcmp.gt.s32.totalorder 0, %v857
        %v859 = vsel %vm858, 0, %v857
        %v860 = vsub.s32 32, %v859
        %v861 = vshll.u32 %v852, %v859
        %v862 = vshrl.u32 %v844, %v860
        %v863 = vor.u32 %v861, %v862
        %v864 = vsub.s32 4294967266, %v859
        %v865 = vadd.s32 %v864, 127
        %v866 = vshll.u32 %v865, 23
        %v867 = vor.u32 4788187, %v866
        %v868 = vand.u32 2147483647, %v867
        %v870 = vcvt.s32.f32 %v863
        %v871 = vmul.f32 %v870, %v868
        %v872 = vxor.u32 %v871, 2147483648
        %v873 = vsel %vm790, %v872, %v871
        %v874 = vsub.s32 4, %v850
        %v875 = vsel %vm790, %v874, %v850
        %v876 = vsel %vm789, %v683, %v873
        %v877 = vsel %vm789, 0, %v875
        %v878 = vcosq.f32.pop %v876
        %v879 = vsinq.f32.pop %v876
        %vm880 = vweird.f32 %v683
        %v881 = vand.u32 %v877, 3
        %vm882 = vcmp.lt.s32.totalorder %v881, 2
        %vm883 = vcmp.eq.s32.totalorder %v881, 0
        %v884 = vxor.u32 %v879, 2147483648
        %v885 = vsel %vm883, %v878, %v884
        %vm886 = vcmp.eq.s32.totalorder %v881, 2
        %v887 = vxor.u32 %v878, 2147483648
        %v888 = vsel %vm886, %v887, %v879
        %v889 = vsel %vm882, %v885, %v888
        %v890 = vsel %vm880, nan, %v889
        %v891 = vmul.f32 %v265, 8.0
        %v892 = vand.u32 2147483647, %v891
        %vm893 = vcmp.le.f32.partialorder %v892, 0.7853982
        %vm894 = vcmp.lt.s32.totalorder %v891, 0
        %v895 = vand.u32 %v891, 2139095040
        %v896 = vshrl.u32 %v895, 23
        %v897 = vsub.s32 %v896, 127
        %v898 = vand.u32 2147483647, %v891
        %v899 = vand.u32 %v898, 8388607
        %v900 = vor.u32 %v899, 8388608
        %v901 = vsub.s32 0, %v900
        %v902 = vadd.s32 %v897, 1
        %vm903 = vcmp.gt.s32.totalorder %v902, 0
        %v904 = vsel %vm903, %v902, 0
        %v905 = vshrl.u32 %v904, 5
        %v906 = vand.u32 %v904, 31
        %v907 = vsub.s32 32, %v906
        %v908 = vshrl.u32 683565275, %v907
        %v909 = vshll.u32 683565275, %v906
        %v910 = vshrl.u32 2475754826, %v907
        %v911 = vor.u32 %v909, %v910
        %v912 = vshll.u32 2475754826, %v906
        %v913 = vshrl.u32 2131351028, %v907
        %v914 = vor.u32 %v912, %v913
        %v915 = vshll.u32 2131351028, %v906
        %v916 = vshrl.u32 2102212464, %v907
        %v917 = vor.u32 %v915, %v916
        %v918 = vshll.u32 2102212464, %v906
        %v919 = vshrl.u32 920167782, %v907
        %v920 = vor.u32 %v918, %v919
        %v921 = vshll.u32 920167782, %v906
        %v922 = vshrl.u32 1326507024, %v907
        %v923 = vor.u32 %v921, %v922
        %vm924 = vcmp.lt.s32.totalorder %v905, 1
        %vm925 = vcmp.lt.s32.totalorder %v905, 2
        %vm926 = vcmp.lt.s32.totalorder %v905, 3
        %vm927 = vcmp.lt.s32.totalorder %v905, 4
        %v928 = vsel %vm924, %v908, %v911
        %v929 = vsel %vm927, %v917, 2102212464
        %v930 = vsel %vm926, %v914, %v929
        %v931 = vsel %vm925, %v928, %v930
        %v932 = vsel %vm924, %v911, %v914
        %v933 = vsel %vm927, %v920, 920167782
        %v934 = vsel %vm926, %v917, %v933
        %v935 = vsel %vm925, %v932, %v934
        %v936 = vsel %vm924, %v914, %v917
        %v937 = vsel %vm927, %v923, 1326507024
        %v938 = vsel %vm926, %v920, %v937
        %v939 = vsel %vm925, %v936, %v938
        %v940 = vshll.u32 %v900, 8
        %v941 = vmul.u32.u64.compose %v940, %v939
        %v942 = vextract.low.u32 %v941
        %v943 = vextract.high.u32 %v941
        %v944 = vmul.u32.u64.compose %v940, %v935
        %v945 = vextract.low.u32 %v944
        %v946 = vextract.high.u32 %v944
        %v947 = vmul.u32 %v940, %v931
        %v948 = vadd.s32 %v943, %v945
        %vm949 = vc.u32 %v943, %v945
        %v950 = vadd.s32 %v946, 1
        %v951 = vsel %vm949, %v950, %v946
        %v952 = vadd.s32 %v947, %v951
        %v953 = vadd.s32 %v952, 536870912
        %v954 = vshrl.u32 %v953, 30
        %v955 = vshll.u32 %v954, 30
        %v956 = vsub.s32 %v952, %v955
        %vm957 = vcmp.lt.s32.totalorder %v956, 0
        %v958 = vsub.s32 0, %v956
        %v959 = vsel %vm957, %v958, %v956
        %v960 = vclz %v959
        %v961 = vsub.s32 %v960, 2
        %vm962 = vcmp.gt.s32.totalorder 0, %v961
        %v963 = vsel %vm962, 0, %v961
        %v964 = vsub.s32 32, %v963
        %v965 = vshll.u32 %v956, %v963
        %v966 = vshrl.u32 %v948, %v964
        %v967 = vor.u32 %v965, %v966
        %v968 = vsub.s32 4294967266, %v963
        %v969 = vadd.s32 %v968, 127
        %v970 = vshll.u32 %v969, 23
        %v971 = vor.u32 4788187, %v970
        %v972 = vand.u32 2147483647, %v971
        %v974 = vcvt.s32.f32 %v967
        %v975 = vmul.f32 %v974, %v972
        %v976 = vxor.u32 %v975, 2147483648
        %v977 = vsel %vm894, %v976, %v975
        %v978 = vsub.s32 4, %v954
        %v979 = vsel %vm894, %v978, %v954
        %v980 = vsel %vm893, %v891, %v977
        %v981 = vsel %vm893, 0, %v979
        %v982 = vcosq.f32.pop %v980
        %v983 = vsinq.f32.pop %v980
        %vm984 = vweird.f32 %v891
        %v985 = vadd.s32 %v981, 3
        %v986 = vand.u32 %v985, 3
        %vm987 = vcmp.lt.s32.totalorder %v986, 2
        %vm988 = vcmp.eq.s32.totalorder %v986, 0
        %v989 = vxor.u32 %v983, 2147483648
        %v990 = vsel %vm988, %v982, %v989
        %vm991 = vcmp.eq.s32.totalorder %v986, 2
        %v992 = vxor.u32 %v982, 2147483648
        %v993 = vsel %vm991, %v992, %v983
        %v994 = vsel %vm987, %v990, %v993
        %v995 = vsel %vm984, nan, %v994
        %v996 = vand.u32 2147483647, %v891
        %vm997 = vcmp.le.f32.partialorder %v996, 0.7853982
        %vm998 = vcmp.lt.s32.totalorder %v891, 0
        %v999 = vand.u32 %v891, 2139095040
        %v1000 = vshrl.u32 %v999, 23
        %v1001 = vsub.s32 %v1000, 127
        %v1002 = vand.u32 2147483647, %v891
        %v1003 = vand.u32 %v1002, 8388607
        %v1004 = vor.u32 %v1003, 8388608
        %v1005 = vsub.s32 0, %v1004
        %v1006 = vadd.s32 %v1001, 1
        %vm1007 = vcmp.gt.s32.totalorder %v1006, 0
        %v1008 = vsel %vm1007, %v1006, 0
        %v1009 = vshrl.u32 %v1008, 5
        %v1010 = vand.u32 %v1008, 31
        %v1011 = vsub.s32 32, %v1010
        %v1012 = vshrl.u32 683565275, %v1011
        %v1013 = vshll.u32 683565275, %v1010
        %v1014 = vshrl.u32 2475754826, %v1011
        %v1015 = vor.u32 %v1013, %v1014
        %v1016 = vshll.u32 2475754826, %v1010
        %v1017 = vshrl.u32 2131351028, %v1011
        %v1018 = vor.u32 %v1016, %v1017
        %v1019 = vshll.u32 2131351028, %v1010
        %v1020 = vshrl.u32 2102212464, %v1011
        %v1021 = vor.u32 %v1019, %v1020
        %v1022 = vshll.u32 2102212464, %v1010
        %v1023 = vshrl.u32 920167782, %v1011
        %v1024 = vor.u32 %v1022, %v1023
        %v1025 = vshll.u32 920167782, %v1010
        %v1026 = vshrl.u32 1326507024, %v1011
        %v1027 = vor.u32 %v1025, %v1026
        %vm1028 = vcmp.lt.s32.totalorder %v1009, 1
        %vm1029 = vcmp.lt.s32.totalorder %v1009, 2
        %vm1030 = vcmp.lt.s32.totalorder %v1009, 3
        %vm1031 = vcmp.lt.s32.totalorder %v1009, 4
        %v1032 = vsel %vm1028, %v1012, %v1015
        %v1033 = vsel %vm1031, %v1021, 2102212464
        %v1034 = vsel %vm1030, %v1018, %v1033
        %v1035 = vsel %vm1029, %v1032, %v1034
        %v1036 = vsel %vm1028, %v1015, %v1018
        %v1037 = vsel %vm1031, %v1024, 920167782
        %v1038 = vsel %vm1030, %v1021, %v1037
        %v1039 = vsel %vm1029, %v1036, %v1038
        %v1040 = vsel %vm1028, %v1018, %v1021
        %v1041 = vsel %vm1031, %v1027, 1326507024
        %v1042 = vsel %vm1030, %v1024, %v1041
        %v1043 = vsel %vm1029, %v1040, %v1042
        %v1044 = vshll.u32 %v1004, 8
        %v1045 = vmul.u32.u64.compose %v1044, %v1043
        %v1046 = vextract.low.u32 %v1045
        %v1047 = vextract.high.u32 %v1045
        %v1048 = vmul.u32.u64.compose %v1044, %v1039
        %v1049 = vextract.low.u32 %v1048
        %v1050 = vextract.high.u32 %v1048
        %v1051 = vmul.u32 %v1044, %v1035
        %v1052 = vadd.s32 %v1047, %v1049
        %vm1053 = vc.u32 %v1047, %v1049
        %v1054 = vadd.s32 %v1050, 1
        %v1055 = vsel %vm1053, %v1054, %v1050
        %v1056 = vadd.s32 %v1051, %v1055
        %v1057 = vadd.s32 %v1056, 536870912
        %v1058 = vshrl.u32 %v1057, 30
        %v1059 = vshll.u32 %v1058, 30
        %v1060 = vsub.s32 %v1056, %v1059
        %vm1061 = vcmp.lt.s32.totalorder %v1060, 0
        %v1062 = vsub.s32 0, %v1060
        %v1063 = vsel %vm1061, %v1062, %v1060
        %v1064 = vclz %v1063
        %v1065 = vsub.s32 %v1064, 2
        %vm1066 = vcmp.gt.s32.totalorder 0, %v1065
        %v1067 = vsel %vm1066, 0, %v1065
        %v1068 = vsub.s32 32, %v1067
        %v1069 = vshll.u32 %v1060, %v1067
        %v1070 = vshrl.u32 %v1052, %v1068
        %v1071 = vor.u32 %v1069, %v1070
        %v1072 = vsub.s32 4294967266, %v1067
        %v1073 = vadd.s32 %v1072, 127
        %v1074 = vshll.u32 %v1073, 23
        %v1075 = vor.u32 4788187, %v1074
        %v1076 = vand.u32 2147483647, %v1075
        %v1078 = vcvt.s32.f32 %v1071
        %v1079 = vmul.f32 %v1078, %v1076
        %v1080 = vxor.u32 %v1079, 2147483648
        %v1081 = vsel %vm998, %v1080, %v1079
        %v1082 = vsub.s32 4, %v1058
        %v1083 = vsel %vm998, %v1082, %v1058
        %v1084 = vsel %vm997, %v891, %v1081
        %v1085 = vsel %vm997, 0, %v1083
        %v1086 = vcosq.f32.pop %v1084
        %v1087 = vsinq.f32.pop %v1084
        %vm1088 = vweird.f32 %v891
        %v1089 = vand.u32 %v1085, 3
        %vm1090 = vcmp.lt.s32.totalorder %v1089, 2
        %vm1091 = vcmp.eq.s32.totalorder %v1089, 0
        %v1092 = vxor.u32 %v1087, 2147483648
        %v1093 = vsel %vm1091, %v1086, %v1092
        %vm1094 = vcmp.eq.s32.totalorder %v1089, 2
        %v1095 = vxor.u32 %v1086, 2147483648
        %v1096 = vsel %vm1094, %v1095, %v1087
        %v1097 = vsel %vm1090, %v1093, %v1096
        %v1098 = vsel %vm1088, nan, %v1097
        %v1100 = vrot.slane %v371, 6
        %v1103 = vrot.slane %v474, 4
        %v1106 = vrot.slane %v579, 2
        %v1109 = vrot.slane %v787, 6
        %v1112 = vrot.slane %v890, 4
        %v1115 = vrot.slane %v995, 2
        %v1118 = vrot.slane %v267, 6
        %vm1120 = vcmask 1041408
        %v1121 = vsel %vm1120, %v265, %v1100
        %vm1122 = vcmask 1043456
        %v1123 = vsel %vm1122, %v1121, %v1103
        %vm1124 = vcmask 1045504
        %v1125 = vsel %vm1124, %v1123, %v1106
        %v1126 = vsel %vm1120, %v682, %v1109
        %v1127 = vsel %vm1122, %v1126, %v1112
        %v1128 = vsel %vm1124, %v1127, %v1115
        %v1129 = vsel %vm1120, %v1098, %v1118
        %v1130 = vpack.c.bf16 %v1128, %v1125
        %v1131 = vpack.c.bf16 %v1129, %v1129
        %v1132 = vld [vmem:[%s2] sm:$0xf]
        %v1133 = vld [vmem:[%s2 + $0x4] sm:$0xf]
        %v1134 = vld [vmem:[%s2 + $0x8] sm:$0xf]
        %v1135 = vld [vmem:[%s2 + $0xc] sm:$0xf]
        %v1136 = vld [vmem:[%s3] sm:$0xff]
        %v1137 = vld [vmem:[%s3 + $0x8] sm:$0xff]
        %v1138 = vld [vmem:[%s3 + $0x10] sm:$0xff]
        %v1139 = vld [vmem:[%s3 + $0x18] sm:$0xff]
        %1141 = vset.pattern.permute.xlu0 0
        %1142 = vperm.xlu0 %1141, %v1136
        %v1143 = vpop.permute.xlu0 %1142
        %1146 = vset.pattern.permute.xlu0 0
        %1147 = vperm.xlu0 %1146, %v1137
        %v1148 = vpop.permute.xlu0 %1147
        %1151 = vset.pattern.permute.xlu0 0
        %1152 = vperm.xlu0 %1151, %v1138
        %v1153 = vpop.permute.xlu0 %1152
        %1156 = vset.pattern.permute.xlu0 0
        %1157 = vperm.xlu0 %1156, %v1139
        %v1158 = vpop.permute.xlu0 %1157
        %v1164 = vunpack.c.l.b16 %v1132
        %v1165 = vunpack.c.l.b16 %v1133
        %v1166 = vunpack.c.l.b16 %v1134
        %v1167 = vunpack.c.l.b16 %v1135
        %v1168 = vpack.c.b16 %v1165, %v1164
        %v1169 = vpack.c.b16 %v1167, %v1166
        %vm1170 = vcmask 195584
        %v1172 = vsel %vm1170, %v1168, 0
        %v1175 = vsel %vm1170, %v1169, 0
        %v1178 = vsel %vm1122, %v1131, 0
        %1180 = vmatprep.subr.bf16.mxu0 0
        %1181 = vmatpush1.bf16.msra.mxu0 %v1130
        %1182 = vmatprep.subr.bf16.mxu0 0
        %1183 = vmatpush1.bf16.msra.mxu0 %v1178
        %1184 = vmatprep.subr.bf16.mxu0 0
        %1185 = vmatpush1.bf16.msra.mxu0 0
        %1186 = vmatprep.subr.bf16.mxu0 0
        %1187 = vmatpush1.bf16.msra.mxu0 0
        %1188 = vmatprep.subr.bf16.mxu0 0
        %1189 = vmatpush1.bf16.msra.mxu0 0
        %1190 = vmatprep.subr.bf16.mxu0 0
        %1191 = vmatpush1.bf16.msra.mxu0 0
        %1192 = vmatprep.subr.bf16.mxu0 0
        %1193 = vmatpush1.bf16.msra.mxu0 0
        %1194 = vmatprep.subr.bf16.mxu0 0
        %1195 = vmatpush1.bf16.msra.mxu0 0
        %1196 = vmatprep.subr.bf16.mxu0 0
        %1197 = vmatpush1.bf16.msra.mxu0 0
        %1198 = vmatprep.subr.bf16.mxu0 0
        %1199 = vmatpush1.bf16.msra.mxu0 0
        %1200 = vmatprep.subr.bf16.mxu0 0
        %1201 = vmatpush1.bf16.msra.mxu0 0
        %1202 = vmatprep.subr.bf16.mxu0 0
        %1203 = vmatpush1.bf16.msra.mxu0 0
        %1204 = vmatprep.subr.bf16.mxu0 0
        %1205 = vmatpush1.bf16.msra.mxu0 0
        %1206 = vmatprep.subr.bf16.mxu0 0
        %1207 = vmatpush1.bf16.msra.mxu0 0
        %1208 = vmatprep.subr.bf16.mxu0 0
        %1209 = vmatpush1.bf16.msra.mxu0 0
        %1210 = vmatprep.subr.bf16.mxu0 0
        %1211 = vmatpush1.bf16.msra.mxu0 0
        %1212 = vmatprep.mubr.bf16.mxu0 0
        %1213 = vmatmul.mubr.bf16.gmra.mrb[0].mxu0 %v1172
        %v1214 = vpop.f32.mrb[0].mxu0
        %v1215 = vadd.f32 %v1143, %v1214
        %v1216 = vpop.f32.mrb[0].mxu0
        %v1217 = vpop.f32.mrb[0].mxu0
        %v1218 = vadd.f32 %v1148, %v1217
        %v1219 = vpop.f32.mrb[0].mxu0
        %1220 = vmatprep.mubr.bf16.mxu0 0
        %1221 = vmatmul.mubr.bf16.gmra.mrb[0].mxu0 %v1175
        %v1222 = vpop.f32.mrb[0].mxu0
        %v1223 = vadd.f32 %v1153, %v1222
        %v1224 = vpop.f32.mrb[0].mxu0
        %v1225 = vpop.f32.mrb[0].mxu0
        %v1226 = vadd.f32 %v1158, %v1225
        %v1227 = vpop.f32.mrb[0].mxu0
        %1228 = vdwg.mxu0
        %v1229 = vmax.f32 %v1215, 0.0
        %v1230 = vmax.f32 %v1218, 0.0
        %v1231 = vmax.f32 %v1223, 0.0
        %v1232 = vmax.f32 %v1226, 0.0
        %v1233 = vld [vmem:[%s4] sm:$0x3]
        %v1234 = vpack.c.bf16 %v1230, %v1229
        %v1235 = vpack.c.bf16 %v1232, %v1231
        %v1236 = vld [vmem:[%s5] sm:$0xf]
        %1238 = vset.pattern.permute.xlu0 0
        %1239 = vperm.xlu0 %1238, %v1236
        %v1240 = vpop.permute.xlu0 %1239
        %vm1242 = vcmask 261120
        %v1244 = vsel %vm1242, %v1233, 0
        %1246 = vmatprep.subr.bf16.mxu0 0
        %1247 = vmatpush1.bf16.msra.mxu0 %v1234
        %1248 = vmatprep.subr.bf16.mxu0 0
        %1249 = vmatpush1.bf16.msra.mxu0 %v1235
        %1250 = vmatprep.subr.bf16.mxu0 0
        %1251 = vmatpush1.bf16.msra.mxu0 0
        %1252 = vmatprep.subr.bf16.mxu0 0
        %1253 = vmatpush1.bf16.msra.mxu0 0
        %1254 = vmatprep.subr.bf16.mxu0 0
        %1255 = vmatpush1.bf16.msra.mxu0 0
        %1256 = vmatprep.subr.bf16.mxu0 0
        %1257 = vmatpush1.bf16.msra.mxu0 0
        %1258 = vmatprep.subr.bf16.mxu0 0
        %1259 = vmatpush1.bf16.msra.mxu0 0
        %1260 = vmatprep.subr.bf16.mxu0 0
        %1261 = vmatpush1.bf16.msra.mxu0 0
        %1262 = vmatprep.subr.bf16.mxu0 0
        %1263 = vmatpush1.bf16.msra.mxu0 0
        %1264 = vmatprep.subr.bf16.mxu0 0
        %1265 = vmatpush1.bf16.msra.mxu0 0
        %1266 = vmatprep.subr.bf16.mxu0 0
        %1267 = vmatpush1.bf16.msra.mxu0 0
        %1268 = vmatprep.subr.bf16.mxu0 0
        %1269 = vmatpush1.bf16.msra.mxu0 0
        %1270 = vmatprep.subr.bf16.mxu0 0
        %1271 = vmatpush1.bf16.msra.mxu0 0
        %1272 = vmatprep.subr.bf16.mxu0 0
        %1273 = vmatpush1.bf16.msra.mxu0 0
        %1274 = vmatprep.subr.bf16.mxu0 0
        %1275 = vmatpush1.bf16.msra.mxu0 0
        %1276 = vmatprep.subr.bf16.mxu0 0
        %1277 = vmatpush1.bf16.msra.mxu0 0
        %1278 = vmatprep.mubr.bf16.mxu0 0
        %1279 = vmatmul.mubr.bf16.gmra.mrb[0].mxu0 %v1244
        %v1280 = vpop.f32.mrb[0].mxu0
        %v1281 = vadd.f32 %v1240, %v1280
        %v1282 = vpop.f32.mrb[0].mxu0
        %v1283 = vpop.f32.mrb[0].mxu0
        %v1284 = vpop.f32.mrb[0].mxu0
        %1285 = vdwg.mxu0
        %v1286 = vadd.f32 %v1281, 2.0
        %v1287 = vsub.f32 0.0, %v1286
        %v1288 = vmul.f32 %v1287, 1.442695
        %v1289 = vpow.pop %v1288
        %v1290 = vadd.f32 %v1289, 1.0
        %v1291 = vrcp.pop %v1290
        %v1292 = vadd.f32 %v1291, 0.001
        %v1293 = vmul.f32 %v265, %v1292
        %v1295 = vrot.slane %v1281, 6
        %v1297 = vadd.f32 %v1293, %v1295
        %v1298 = vlog2.pop %v1292
        %v1299 = vmul.f32 %v1298, 0.6931472
        %v1301 = vrot.slane %v1299, 2
        %v1303 = vsel %vm1120, %v1301, 0.0
        %v1304 = vrot.slane %v1303, 4
        %v1305 = vadd.f32 %v1303, %v1304
        %v1306 = vrot.slane %v1305, 2
        %v1307 = vadd.f32 %v1305, %v1306
        %v1308 = vrot.slane %v1307, 1
        %v1309 = vadd.f32 %v1307, %v1308
        %v1310 = vsel %vm1120, %v265, %v1297
        %v1311 = vsel %vm1122, %v1310, %v1309
        %1312 = vst [vmem:[%s255] sm:$0x1f] %v1311
        %s1313 = sand.u32 %s164, 1
        %s1314 = scalar_lea.sflag [#allocation3], %s1313
        %s1315 = sand.u32 %s164, 1
        %s1316 = smul.addr %s1315, 8
        %s1317 = scalar_lea.vmem [#allocation2], %s1316
        // Predicated region
        $region45: #{tpu_custom_call.1} parent=43 // pred_check
          %p1318 = pneg %p174
        $region46: #{tpu_custom_call.1} parent=43 // pred_check_branch
          %1320 = sbr.rel (%p1318) target = $region48
        $region47: #{tpu_custom_call.1} parent=43 // pred_region
          %s1322 = ssub.s32 128, 128
          %1323 = vsyncadd %s1314, %s1322
          %s1324 = smul.addr %s20, 128
          %s1325 = scalar_lea.hbm %s6, %s1324
          %s1327 = sshll.u32 %s1317, 4
          %s1328 = int_to_ptr.vmem [resolvable:$true] %s1327
          %1330 = dma.vmem_to_hbm [thread:$0]  %s1328, 128, %s1325, %s1314
        $region48: #{tpu_custom_call.1} parent=43 // pred_fallthru
          _
      $region44: #{tpu_custom_call.1} parent=5 // pred_fallthru
        _
      %p1331 = scmp.le.s32.totalorder 2, %s15
      // Predicated region
      $region49: #{tpu_custom_call.1} parent=5 // pred_check
        %p1332 = pneg %p1331
      $region50: #{tpu_custom_call.1} parent=5 // pred_check_branch
        %1334 = sbr.rel (%p1332) target = $region52
      $region51: #{tpu_custom_call.1} parent=5 // pred_region
        %s1335 = ssub.s32 %s15, 2
        // Predicated region
        $region53: #{tpu_custom_call.1} parent=51 // pred_check
          %p1336 = pneg %p180
        $region54: #{tpu_custom_call.1} parent=51 // pred_check_branch
          %1338 = sbr.rel (%p1336) target = $region56
        $region55: #{tpu_custom_call.1} parent=51 // pred_region
          %s1339 = sand.u32 %s165, 1
          %s1340 = scalar_lea.sflag [#allocation3], %s1339
          %s1341 = sand.u32 %s165, 1
          %s1342 = smul.addr %s1341, 8
          %s1343 = scalar_lea.vmem [#allocation2], %s1342
          %1344 = dma.done %s1340, 128
        $region56: #{tpu_custom_call.1} parent=51 // pred_fallthru
          _
      $region52: #{tpu_custom_call.1} parent=5 // pred_fallthru
        _
    $region6: #{tpu_custom_call.1} parent=1 // loop_footer
      %s19 = sadd.s32 1, %s15
    $region7: #{tpu_custom_call.1} parent=1 // loop_footer_branch
      %14 = sbr.rel target = $region3
    $region8: #{tpu_custom_call.1} parent=1 // loop_exit
      _
    %1345 = vsyncpa [#allocation3], 1
    %s1346 = scalar_lea.sflag [#allocation3], 1
    %1347 = vsyncpa %s1346, 1

</llo_original>
